<compile_context>
chip_gen: v7x
topology: tpu7x:2x2x1
jax: 0.10.0
libtpu: 0.0.40
codegen_flags: <defaults>
</compile_context>

<pallas_src>
import jax
import jax.numpy as jnp
from jax import lax
from jax.experimental import pallas as pl
from jax.experimental.pallas import tpu as pltpu


def resnet_block_kernel(x_ref, w_ref, bn_ref, o_ref):
    """Single fused MXU push + lane-dense epilogue.

    x_ref : (M, 3*W*Cin)         K-concat of the three height-shifted row views
    w_ref : (3*W*Cin, 2*W*Cout)  [ banded-conv1 | 1x1-skip ] columns; bn1/bn3
                                 scales pre-folded into the columns
    bn_ref: (8, W*Cout)          row0 = b1, row1 = s2, row2 = b2 + b3
    o_ref : (M, W*Cout)
    """
    wc_out = o_ref.shape[1]
    r = jnp.dot(x_ref[...], w_ref[...], preferred_element_type=jnp.float32)
    main = r[:, :wc_out]          # conv1 * s1  (bn1 scale folded into weights)
    skip = r[:, wc_out:]          # conv3(1x1) * s3 (bn3 scale folded)
    b1 = bn_ref[0:1, :]
    s2 = bn_ref[1:2, :]
    b23 = bn_ref[2:3, :]
    h = jnp.maximum(main + b1, 0.0)                    # bn1 shift + relu
    # NOTE: original module computes self.conv2(out) but discards the result,
    # so bn2 applies directly to h; bn2/bn3 shifts pre-folded into b23.
    o_ref[...] = jnp.maximum(h * s2 + skip + b23, 0.0)


def _fold_bn(bn_params):
    gamma, beta, mean, var, eps = bn_params
    scale = gamma / jnp.sqrt(var + eps)
    shift = beta - mean * scale
    return scale.astype(jnp.float32), shift.astype(jnp.float32)


def prepare_block_params(params, W):
    """One-time (parameter-load-time) prep: banded conv weights with bn1/bn3
    scales folded into the columns, plus packed BN shift/scale rows.
    Returns (w_full (3*W*Cin, 2*W*Cout), bn_pack (8, W*Cout))."""
    w1 = params["w1"].astype(jnp.float32)     # (3, 3, Cin, Cout) HWIO
    w3 = params["w3"].astype(jnp.float32)     # (Cin, Cout) 1x1 projection
    Cin, Cout = w1.shape[2], w1.shape[3]
    WC_in, WC_out = W * Cin, W * Cout

    s1, b1 = _fold_bn(params["bn1"])
    s2, b2 = _fold_bn(params["bn2"])
    s3, b3 = _fold_bn(params["bn3"])

    # Width-shift selector: S[dx, p, w] = 1 iff input column p feeds output
    # column w through width tap dx (pad=1).  Width zero-padding = zero rows.
    dxs = jnp.arange(3)
    p = jnp.arange(W)
    w = jnp.arange(W)
    S = (p[None, :, None] == (w[None, None, :] + dxs[:, None, None] - 1)
         ).astype(jnp.float32)
    wmain = jnp.einsum("xpw,yxio->ypiwo", S, w1)          # (3, W, Cin, W, Cout)
    wmain = wmain * s1[None, None, None, None, :]          # fold bn1 scale
    wmain = wmain.reshape(3 * WC_in, WC_out)

    wskip = jnp.einsum("pw,io->piwo", jnp.eye(W, dtype=jnp.float32), w3)
    wskip = wskip * s3[None, None, None, :]                # fold bn3 scale
    wskip = wskip.reshape(WC_in, WC_out)

    # Single (3*W*Cin, 2*W*Cout) weight: left half = banded conv1 (all three
    # height taps), right half = 1x1 skip riding only the center-tap K block.
    w_full = jnp.zeros((3 * WC_in, 2 * WC_out), jnp.float32)
    w_full = w_full.at[:, :WC_out].set(wmain)
    w_full = w_full.at[WC_in:2 * WC_in, WC_out:].set(wskip)

    def tile_lane(v):                                      # (Cout,) -> (W*Cout,)
        return jnp.tile(v, W)

    bn_pack = jnp.zeros((8, WC_out), jnp.float32)
    bn_pack = bn_pack.at[0].set(tile_lane(b1))
    bn_pack = bn_pack.at[1].set(tile_lane(s2))
    bn_pack = bn_pack.at[2].set(tile_lane(b2 + b3))
    return w_full, bn_pack


@jax.jit
def resnet_block_forward(x_nchw, w_full, bn_pack):
    """Forward: NCHW in -> NCHW out, using the prebuilt weights/BN pack."""
    N, Cin, H, W = x_nchw.shape
    WC_in = W * Cin
    WC_out = bn_pack.shape[1]
    Cout = WC_out // W
    M = N * H

    x = jnp.transpose(x_nchw, (0, 2, 3, 1)).astype(jnp.float32)   # NHWC
    xr = x.reshape(N, H, WC_in)
    xp = jnp.pad(xr, ((0, 0), (1, 1), (0, 0)))                    # height halo
    # K-concat of the three height-shifted row views (per-image boundaries
    # handled here, so the batch axis can merge into M).
    xk = jnp.concatenate([xp[:, 0:H], xp[:, 1:H + 1], xp[:, 2:H + 2]],
                         axis=-1).reshape(M, 3 * WC_in)

    out = pl.pallas_call(
        resnet_block_kernel,
        out_shape=jax.ShapeDtypeStruct((M, WC_out), jnp.float32),
        grid=(1,),
        in_specs=[
            pl.BlockSpec((M, 3 * WC_in), lambda i: (0, 0)),        # x rows
            pl.BlockSpec((3 * WC_in, 2 * WC_out), lambda i: (0, 0)),  # weights
            pl.BlockSpec((8, WC_out), lambda i: (0, 0)),           # BN pack
        ],
        out_specs=pl.BlockSpec((M, WC_out), lambda i: (0, 0)),
        compiler_params=pltpu.CompilerParams(
            dimension_semantics=("arbitrary",)),
    )(xk, w_full, bn_pack)

    return jnp.transpose(out.reshape(N, H, W, Cout), (0, 3, 1, 2))  # NCHW


def reference_forward(x_nchw, params):
    """Pure-JAX reference (same semantics, incl. discarded conv2)."""
    x = jnp.transpose(x_nchw, (0, 2, 3, 1)).astype(jnp.float32)
    w1, w3 = params["w1"], params["w3"]

    def bn(h, p):
        gamma, beta, mean, var, eps = p
        return gamma * (h - mean) / jnp.sqrt(var + eps) + beta

    h = lax.conv_general_dilated(x, w1, window_strides=(1, 1),
                                 padding=((1, 1), (1, 1)),
                                 dimension_numbers=("NHWC", "HWIO", "NHWC"),
                                 precision=lax.Precision.HIGHEST)
    h = bn(h, params["bn1"])
    h = jnp.maximum(h, 0.0)
    # conv2 result discarded in the original code
    h = bn(h, params["bn2"])
    sk = lax.conv_general_dilated(x, w3[None, None], window_strides=(1, 1),
                                  padding=((0, 0), (0, 0)),
                                  dimension_numbers=("NHWC", "HWIO", "NHWC"),
                                  precision=lax.Precision.HIGHEST)
    sk = bn(sk, params["bn3"])
    out = jnp.maximum(h + sk, 0.0)
    return jnp.transpose(out, (0, 3, 1, 2))


if __name__ == "__main__":
    # Config: in_channels=4, out_channels=8, stride=1, doSkip=True, doBn=True
    # -> projection skip (conv3 + bn3) since Cin != Cout.
    N, Cin, H, W = 2, 4, 16, 16
    Cout = 8

    key = jax.random.PRNGKey(0)
    k = jax.random.split(key, 15)
    x = jax.random.normal(k[0], (N, Cin, H, W), jnp.float32)

    # Deterministic synthetic parameter init (shapes match the nn.Module).
    w1 = jax.random.normal(k[1], (3, 3, Cin, Cout), jnp.float32) / jnp.sqrt(9.0 * Cin)
    w3 = jax.random.normal(k[2], (Cin, Cout), jnp.float32) / jnp.sqrt(1.0 * Cin)

    def make_bn(ka, kb, kc, kd):
        gamma = 1.0 + 0.1 * jax.random.normal(ka, (Cout,), jnp.float32)
        beta = 0.1 * jax.random.normal(kb, (Cout,), jnp.float32)
        mean = 0.1 * jax.random.normal(kc, (Cout,), jnp.float32)
        var = jnp.abs(jax.random.normal(kd, (Cout,), jnp.float32)) + 0.5
        return (gamma, beta, mean, var, 1e-5)   # inference-mode BN

    params = dict(
        w1=w1, w3=w3,
        bn1=make_bn(k[3], k[4], k[5], k[6]),
        bn2=make_bn(k[7], k[8], k[9], k[10]),
        bn3=make_bn(k[11], k[12], k[13], k[14]),
    )

    # One-time parameter prep (hoisted out of the forward path).
    w_full, bn_pack = prepare_block_params(params, W)
    w_full = jax.block_until_ready(w_full)
    bn_pack = jax.block_until_ready(bn_pack)

    out = jax.block_until_ready(resnet_block_forward(x, w_full, bn_pack))
    ref = reference_forward(x, params)

    assert out.shape == (N, Cout, H, W), out.shape
    err = float(jnp.max(jnp.abs(out - ref)))
    assert jnp.allclose(out, ref, atol=1e-4, rtol=1e-4), err

    print("KERNEL_OK")
</pallas_src>

<mosaic_0001>
module attributes {stable_mosaic.version = 11 : i64} {
  func.func @resnet_block_kernel(%arg0: i32, %arg1: memref<32x192xf32, #tpu.memory_space<vmem>>, %arg2: memref<192x256xf32, #tpu.memory_space<vmem>>, %arg3: memref<8x128xf32, #tpu.memory_space<vmem>>, %arg4: memref<32x128xf32, #tpu.memory_space<vmem>>) attributes {dimension_semantics = [#tpu.dimension_semantics<arbitrary>], iteration_bounds = array<i64: 1>, scalar_prefetch = 0 : i64, scratch_operands = 0 : i64, tpu.core_type = #tpu.core_type<tc>, window_params = [{pipeline_mode = #tpu.pipeline_mode<synchronous>, transform_indices = @transform_0, window_bounds = array<i64: 32, 192>}, {pipeline_mode = #tpu.pipeline_mode<synchronous>, transform_indices = @transform_1, window_bounds = array<i64: 192, 256>}, {pipeline_mode = #tpu.pipeline_mode<synchronous>, transform_indices = @transform_2, window_bounds = array<i64: 8, 128>}, {pipeline_mode = #tpu.pipeline_mode<synchronous>, transform_indices = @transform_3, window_bounds = array<i64: 32, 128>}]} {
    %c0 = arith.constant 0 : index
    %c0_0 = arith.constant 0 : index
    %0 = vector.load %arg1[%c0, %c0_0] : memref<32x192xf32, #tpu.memory_space<vmem>>, vector<32x192xf32>
    %c0_1 = arith.constant 0 : index
    %c0_2 = arith.constant 0 : index
    %1 = vector.load %arg2[%c0_1, %c0_2] : memref<192x256xf32, #tpu.memory_space<vmem>>, vector<192x256xf32>
    %cst = arith.constant dense<0.000000e+00> : vector<32x256xf32>
    %2 = tpu.matmul %0, %1, %cst {dimension_numbers = #tpu.dot_dimension_numbers<[1], [0], [0], [1], [0, 0, 1, 1], [], []>} : vector<32x192xf32>, vector<192x256xf32>, vector<32x256xf32> -> vector<32x256xf32>
    %3 = vector.extract_strided_slice %2 {offsets = [0, 0], sizes = [32, 128], strides = [1, 1]} : vector<32x256xf32> to vector<32x128xf32>
    %4 = vector.extract_strided_slice %2 {offsets = [0, 128], sizes = [32, 128], strides = [1, 1]} : vector<32x256xf32> to vector<32x128xf32>
    %c0_3 = arith.constant 0 : index
    %c0_4 = arith.constant 0 : index
    %5 = vector.load %arg3[%c0_3, %c0_4] : memref<8x128xf32, #tpu.memory_space<vmem>>, vector<1x128xf32>
    %c1 = arith.constant 1 : index
    %c0_5 = arith.constant 0 : index
    %6 = vector.load %arg3[%c1, %c0_5] : memref<8x128xf32, #tpu.memory_space<vmem>>, vector<1x128xf32>
    %c2 = arith.constant 2 : index
    %c0_6 = arith.constant 0 : index
    %7 = vector.load %arg3[%c2, %c0_6] : memref<8x128xf32, #tpu.memory_space<vmem>>, vector<1x128xf32>
    %8 = vector.broadcast %5 : vector<1x128xf32> to vector<32x128xf32>
    %9 = arith.addf %3, %8 : vector<32x128xf32>
    %cst_7 = arith.constant 0.000000e+00 : f32
    %10 = vector.broadcast %cst_7 : f32 to vector<32x128xf32>
    %11 = arith.maximumf %9, %10 : vector<32x128xf32>
    %12 = vector.broadcast %6 : vector<1x128xf32> to vector<32x128xf32>
    %13 = arith.mulf %11, %12 : vector<32x128xf32>
    %14 = arith.addf %13, %4 : vector<32x128xf32>
    %15 = vector.broadcast %7 : vector<1x128xf32> to vector<32x128xf32>
    %16 = arith.addf %14, %15 : vector<32x128xf32>
    %cst_8 = arith.constant 0.000000e+00 : f32
    %17 = vector.broadcast %cst_8 : f32 to vector<32x128xf32>
    %18 = arith.maximumf %16, %17 : vector<32x128xf32>
    %c0_9 = arith.constant 0 : index
    %c0_10 = arith.constant 0 : index
    %19 = vector.load %arg4[%c0_9, %c0_10] : memref<32x128xf32, #tpu.memory_space<vmem>>, vector<32x128xf32>
    tpu.vector_store %arg4[%c0_9, %c0_10], %18 {strides = array<i32>} : memref<32x128xf32, #tpu.memory_space<vmem>>, vector<32x128xf32>,
    return
  }
  func.func @transform_0(%arg0: i32) -> (i32, i32) {
    %c0_i32 = arith.constant 0 : i32
    %c0_i32_0 = arith.constant 0 : i32
    %c0_i32_1 = arith.constant 0 : i32
    return %c0_i32, %c0_i32_0 : i32, i32
  }
  func.func @transform_1(%arg0: i32) -> (i32, i32) {
    %c0_i32 = arith.constant 0 : i32
    %c0_i32_0 = arith.constant 0 : i32
    %c0_i32_1 = arith.constant 0 : i32
    return %c0_i32, %c0_i32_0 : i32, i32
  }
  func.func @transform_2(%arg0: i32) -> (i32, i32) {
    %c0_i32 = arith.constant 0 : i32
    %c0_i32_0 = arith.constant 0 : i32
    %c0_i32_1 = arith.constant 0 : i32
    return %c0_i32, %c0_i32_0 : i32, i32
  }
  func.func @transform_3(%arg0: i32) -> (i32, i32) {
    %c0_i32 = arith.constant 0 : i32
    %c0_i32_0 = arith.constant 0 : i32
    %c0_i32_1 = arith.constant 0 : i32
    return %c0_i32, %c0_i32_0 : i32, i32
  }
}

</mosaic_0001>

<llo_original>
// kernel: resnet_block_forward.1
$region0: #{resnet_block_forward.1}
  #allocation0 [shape = 'u32[]', space=smem, size = 0x4, offset = 0x4, fixed_abs, tag = 'smem constant byte address 0x4 - core index']
  #allocation1 [shape = 'u32[144,128]{1,0:T(1,128)}', space=vmem, size = 0x12000, scoped, tag = 'internal scratch']
  %s0 = inlined_call_operand.vmem [shape: f32[32,192], index: 0, kind: input, shape index: {}]
  %s1 = inlined_call_operand.vmem [shape: f32[192,256], index: 1, kind: input, shape index: {}]
  %s2 = inlined_call_operand.vmem [shape: f32[8,128], index: 2, kind: input, shape index: {}]
  %s3 = inlined_call_operand.vmem [shape: f32[32,128], index: 3, kind: output, shape index: {}]
  %s4 = sld [smem:[#allocation0]]
  $region22: #{resnet_block_forward.1} parent=0
    _
  %s6 = ssub.s32 1, %s4
  %s7 = scalar_select 0, %s6, %s4
  // Predicated region
  $region2: #{resnet_block_forward.1} parent=0 // pred_check
    _
  $region3: #{resnet_block_forward.1} parent=0 // pred_check_branch
    %9 = sbr.rel (0) target = $region5
  $region4: #{resnet_block_forward.1} parent=0 // pred_region
    _
  $region5: #{resnet_block_forward.1} parent=0 // pred_fallthru
    _
  // Predicated region
  $region6: #{resnet_block_forward.1} parent=0 // pred_check
    _
  $region7: #{resnet_block_forward.1} parent=0 // pred_check_branch
    %11 = sbr.rel (0) target = $region9
  $region8: #{resnet_block_forward.1} parent=0 // pred_region
    _
  $region9: #{resnet_block_forward.1} parent=0 // pred_fallthru
    _
  // Predicated region
  $region10: #{resnet_block_forward.1} parent=0 // pred_check
    _
  $region11: #{resnet_block_forward.1} parent=0 // pred_check_branch
    %13 = sbr.rel (0) target = $region13
  $region12: #{resnet_block_forward.1} parent=0 // pred_region
    _
  $region13: #{resnet_block_forward.1} parent=0 // pred_fallthru
    _
  %v14 = vld [vmem:[%s0] sm:$0xff]
  %v15 = vld [vmem:[%s0 + $0x8] sm:$0xff]
  %v16 = vld [vmem:[%s0 + $0x10] sm:$0xff]
  %v17 = vld [vmem:[%s0 + $0x18] sm:$0xff]
  %v18 = vld [vmem:[%s0 + $0x20] sm:$0xff]
  %v19 = vld [vmem:[%s0 + $0x28] sm:$0xff]
  %v20 = vld [vmem:[%s0 + $0x30] sm:$0xff]
  %v21 = vld [vmem:[%s0 + $0x38] sm:$0xff]
  %v22 = vld [vmem:[%s1] sm:$0xff]
  %v23 = vld [vmem:[%s1 + $0x8] sm:$0xff]
  %v24 = vld [vmem:[%s1 + $0x10] sm:$0xff]
  %v25 = vld [vmem:[%s1 + $0x18] sm:$0xff]
  %v26 = vld [vmem:[%s1 + $0x20] sm:$0xff]
  %v27 = vld [vmem:[%s1 + $0x28] sm:$0xff]
  %v28 = vld [vmem:[%s1 + $0x30] sm:$0xff]
  %v29 = vld [vmem:[%s1 + $0x38] sm:$0xff]
  %v30 = vld [vmem:[%s1 + $0x40] sm:$0xff]
  %v31 = vld [vmem:[%s1 + $0x48] sm:$0xff]
  %v32 = vld [vmem:[%s1 + $0x50] sm:$0xff]
  %v33 = vld [vmem:[%s1 + $0x58] sm:$0xff]
  %v34 = vld [vmem:[%s1 + $0x60] sm:$0xff]
  %v35 = vld [vmem:[%s1 + $0x68] sm:$0xff]
  %v36 = vld [vmem:[%s1 + $0x70] sm:$0xff]
  %v37 = vld [vmem:[%s1 + $0x78] sm:$0xff]
  %v38 = vld [vmem:[%s1 + $0x80] sm:$0xff]
  %v39 = vld [vmem:[%s1 + $0x88] sm:$0xff]
  %v40 = vld [vmem:[%s1 + $0x90] sm:$0xff]
  %v41 = vld [vmem:[%s1 + $0x98] sm:$0xff]
  %v42 = vld [vmem:[%s1 + $0xa0] sm:$0xff]
  %v43 = vld [vmem:[%s1 + $0xa8] sm:$0xff]
  %v44 = vld [vmem:[%s1 + $0xb0] sm:$0xff]
  %v45 = vld [vmem:[%s1 + $0xb8] sm:$0xff]
  %v46 = vld [vmem:[%s1 + $0xc0] sm:$0xff]
  %v47 = vld [vmem:[%s1 + $0xc8] sm:$0xff]
  %v48 = vld [vmem:[%s1 + $0xd0] sm:$0xff]
  %v49 = vld [vmem:[%s1 + $0xd8] sm:$0xff]
  %v50 = vld [vmem:[%s1 + $0xe0] sm:$0xff]
  %v51 = vld [vmem:[%s1 + $0xe8] sm:$0xff]
  %v52 = vld [vmem:[%s1 + $0xf0] sm:$0xff]
  %v53 = vld [vmem:[%s1 + $0xf8] sm:$0xff]
  %v54 = vld [vmem:[%s1 + $0x100] sm:$0xff]
  %v55 = vld [vmem:[%s1 + $0x108] sm:$0xff]
  %v56 = vld [vmem:[%s1 + $0x110] sm:$0xff]
  %v57 = vld [vmem:[%s1 + $0x118] sm:$0xff]
  %v58 = vld [vmem:[%s1 + $0x120] sm:$0xff]
  %v59 = vld [vmem:[%s1 + $0x128] sm:$0xff]
  %v60 = vld [vmem:[%s1 + $0x130] sm:$0xff]
  %v61 = vld [vmem:[%s1 + $0x138] sm:$0xff]
  %v62 = vld [vmem:[%s1 + $0x140] sm:$0xff]
  %v63 = vld [vmem:[%s1 + $0x148] sm:$0xff]
  %v64 = vld [vmem:[%s1 + $0x150] sm:$0xff]
  %v65 = vld [vmem:[%s1 + $0x158] sm:$0xff]
  %v66 = vld [vmem:[%s1 + $0x160] sm:$0xff]
  %v67 = vld [vmem:[%s1 + $0x168] sm:$0xff]
  %v68 = vld [vmem:[%s1 + $0x170] sm:$0xff]
  %v69 = vld [vmem:[%s1 + $0x178] sm:$0xff]
  %vm70 = vcmask 523264
  %v72 = vsel %vm70, %v15, 0
  %v75 = vsel %vm70, %v17, 0
  %v78 = vsel %vm70, %v19, 0
  %v81 = vsel %vm70, %v21, 0
  %83 = vmatprep.subr.mxu0 %v23
  %84 = vmatpush1.msra.mxu0 %v22
  %85 = vmatprep.subr.mxu0 %v25
  %86 = vmatpush1.msra.mxu0 %v24
  %87 = vmatprep.subr.mxu0 %v27
  %88 = vmatpush1.msra.mxu0 %v26
  %89 = vmatprep.subr.mxu0 %v29
  %90 = vmatpush1.msra.mxu0 %v28
  %91 = vmatprep.subr.mxu0 %v31
  %92 = vmatpush1.msra.mxu0 %v30
  %93 = vmatprep.subr.mxu0 %v33
  %94 = vmatpush1.msra.mxu0 %v32
  %95 = vmatprep.subr.mxu0 %v35
  %96 = vmatpush1.msra.mxu0 %v34
  %97 = vmatprep.subr.mxu0 %v37
  %98 = vmatpush1.msra.mxu0 %v36
  %99 = vmatprep.subr.mxu0 %v39
  %100 = vmatpush1.msra.mxu0 %v38
  %101 = vmatprep.subr.mxu0 %v41
  %102 = vmatpush1.msra.mxu0 %v40
  %103 = vmatprep.subr.mxu0 %v43
  %104 = vmatpush1.msra.mxu0 %v42
  %105 = vmatprep.subr.mxu0 %v45
  %106 = vmatpush1.msra.mxu0 %v44
  %107 = vmatprep.subr.mxu0 %v47
  %108 = vmatpush1.msra.mxu0 %v46
  %109 = vmatprep.subr.mxu0 %v49
  %110 = vmatpush1.msra.mxu0 %v48
  %111 = vmatprep.subr.mxu0 %v51
  %112 = vmatpush1.msra.mxu0 %v50
  %113 = vmatprep.subr.mxu0 %v53
  %114 = vmatpush1.msra.mxu0 %v52
  %115 = vmatprep.subr.mxu0 %v55
  %116 = vmatpush1.msra.mxu0 %v54
  %117 = vmatprep.subr.mxu0 %v57
  %118 = vmatpush1.msra.mxu0 %v56
  %119 = vmatprep.subr.mxu0 %v59
  %120 = vmatpush1.msra.mxu0 %v58
  %121 = vmatprep.subr.mxu0 %v61
  %122 = vmatpush1.msra.mxu0 %v60
  %123 = vmatprep.subr.mxu0 %v63
  %124 = vmatpush1.msra.mxu0 %v62
  %125 = vmatprep.subr.mxu0 %v65
  %126 = vmatpush1.msra.mxu0 %v64
  %127 = vmatprep.subr.mxu0 %v67
  %128 = vmatpush1.msra.mxu0 %v66
  %129 = vmatprep.subr.mxu0 %v69
  %130 = vmatpush1.msra.mxu0 %v68
  %131 = vmatprep.subr.mxu0 0.0
  %132 = vmatpush1.msra.mxu0 0.0
  %133 = vmatprep.subr.mxu0 0.0
  %134 = vmatpush1.msra.mxu0 0.0
  %135 = vmatprep.subr.mxu0 0.0
  %136 = vmatpush1.msra.mxu0 0.0
  %137 = vmatprep.subr.mxu0 0.0
  %138 = vmatpush1.msra.mxu0 0.0
  %139 = vmatprep.subr.mxu0 0.0
  %140 = vmatpush1.msra.mxu0 0.0
  %141 = vmatprep.subr.mxu0 0.0
  %142 = vmatpush1.msra.mxu0 0.0
  %143 = vmatprep.subr.mxu0 0.0
  %144 = vmatpush1.msra.mxu0 0.0
  %145 = vmatprep.subr.mxu0 0.0
  %146 = vmatpush1.msra.mxu0 0.0
  %147 = vmatprep.mubr.f32.mxu0 %v72
  %148 = vmatmul.mubr.f32.gmra.mrb[0].mxu0 %v14
  %v149 = vpop.f32.mrb[0].mxu0
  %v150 = vadd.f32 0.0, %v149
  %v151 = vpop.f32.mrb[0].mxu0
  %v152 = vadd.f32 0.0, %v151
  %153 = vmatprep.mubr.f32.mxu0 %v75
  %154 = vmatmul.mubr.f32.gmra.mrb[0].mxu0 %v16
  %v155 = vpop.f32.mrb[0].mxu0
  %v156 = vadd.f32 0.0, %v155
  %v157 = vpop.f32.mrb[0].mxu0
  %v158 = vadd.f32 0.0, %v157
  %159 = vmatprep.mubr.f32.mxu0 %v78
  %160 = vmatmul.mubr.f32.gmra.mrb[0].mxu0 %v18
  %v161 = vpop.f32.mrb[0].mxu0
  %v162 = vadd.f32 0.0, %v161
  %v163 = vpop.f32.mrb[0].mxu0
  %v164 = vadd.f32 0.0, %v163
  %165 = vmatprep.mubr.f32.mxu0 %v81
  %166 = vmatmul.mubr.f32.gmra.mrb[0].mxu0 %v20
  %v167 = vpop.f32.mrb[0].mxu0
  %v168 = vadd.f32 0.0, %v167
  %v169 = vpop.f32.mrb[0].mxu0
  %v170 = vadd.f32 0.0, %v169
  %171 = vdwg.mxu0
  %v172 = vld [vmem:[%s2] sm:$0x1]
  %v173 = vld [vmem:[%s2 + $0x1] sm:$0x1]
  %v174 = vld [vmem:[%s2 + $0x2] sm:$0x1]
  %v175 = vlaneseq
  %v176 = vshrl.u32 %v175, 7
  %v177 = vsub.s32 0, %v176
  %v178 = vrot.slane %v172, %v177
  %v179 = vadd.f32 %v150, %v178
  %v180 = vadd.f32 %v156, %v178
  %v181 = vadd.f32 %v162, %v178
  %v182 = vadd.f32 %v168, %v178
  %v183 = vmax.f32 %v179, 0.0
  %v184 = vmax.f32 %v180, 0.0
  %v185 = vmax.f32 %v181, 0.0
  %v186 = vmax.f32 %v182, 0.0
  %v187 = vlaneseq
  %v188 = vshrl.u32 %v187, 7
  %v189 = vsub.s32 0, %v188
  %v190 = vrot.slane %v173, %v189
  %v191 = vmul.f32 %v183, %v190
  %v192 = vmul.f32 %v184, %v190
  %v193 = vmul.f32 %v185, %v190
  %v194 = vmul.f32 %v186, %v190
  %v195 = vadd.f32 %v191, %v152
  %v196 = vadd.f32 %v192, %v158
  %v197 = vadd.f32 %v193, %v164
  %v198 = vadd.f32 %v194, %v170
  %v199 = vlaneseq
  %v200 = vshrl.u32 %v199, 7
  %v201 = vsub.s32 0, %v200
  %v202 = vrot.slane %v174, %v201
  %v203 = vadd.f32 %v195, %v202
  %v204 = vadd.f32 %v196, %v202
  %v205 = vadd.f32 %v197, %v202
  %v206 = vadd.f32 %v198, %v202
  %v207 = vmax.f32 %v203, 0.0
  %v208 = vmax.f32 %v204, 0.0
  %v209 = vmax.f32 %v205, 0.0
  %v210 = vmax.f32 %v206, 0.0
  %211 = vst [vmem:[%s3] sm:$0xff] %v207
  %212 = vst [vmem:[%s3 + $0x8] sm:$0xff] %v208
  %213 = vst [vmem:[%s3 + $0x10] sm:$0xff] %v209
  %214 = vst [vmem:[%s3 + $0x18] sm:$0xff] %v210
  // Predicated region
  $region14: #{resnet_block_forward.1} parent=0 // pred_check
    _
  $region15: #{resnet_block_forward.1} parent=0 // pred_check_branch
    %216 = sbr.rel (0) target = $region17
  $region16: #{resnet_block_forward.1} parent=0 // pred_region
    _
  $region17: #{resnet_block_forward.1} parent=0 // pred_fallthru
    _
  // Predicated region
  $region18: #{resnet_block_forward.1} parent=0 // pred_check
    _
  $region19: #{resnet_block_forward.1} parent=0 // pred_check_branch
    %218 = sbr.rel (0) target = $region21
  $region20: #{resnet_block_forward.1} parent=0 // pred_region
    _
  $region21: #{resnet_block_forward.1} parent=0 // pred_fallthru
    _

</llo_original>
